<compile_context>
chip_gen: v6e
topology: v6e:2x2x1
jax: 0.10.0
libtpu: 0.0.40
codegen_flags: <defaults>
</compile_context>

<pallas_src>
import jax
import jax.numpy as jnp
from jax.experimental import pallas as pl
from jax.experimental.pallas import tpu as pltpu


def _round_up(x, m):
    return ((x + m - 1) // m) * m


def _mlp_kernel(xt_ref, w1_ref, b1_ref, w2_ref, b2_ref, w3_ref, b3_ref, o_ref):
    # xt_ref: (8, TB)  compute dtype, batch on the lane axis (lane-dense loads)
    # w1_ref: (64, 8), w2_ref: (32, 64)  compute dtype (PyTorch (out,in) layout)
    # b1_ref: (64, 1), b2_ref: (32, 1), w3_ref: (32, 1), b3_ref: (1, 1)  f32
    # o_ref : (1, TB)  f32, batch on the lane axis (lane-dense, unmasked stores)
    x = jnp.maximum(xt_ref[...], 0.0)                                 # relu before fc1
    h1 = jnp.dot(w1_ref[...], x, preferred_element_type=jnp.float32)  # (64, TB)
    h1 = jnp.maximum(h1 + b1_ref[...], 0.0)                           # fc1 bias + relu (f32)
    h2 = jnp.dot(w2_ref[...], h1.astype(w2_ref.dtype),
                 preferred_element_type=jnp.float32)                  # (32, TB)
    h2 = jnp.maximum(h2 + b2_ref[...], 0.0)                           # fc2 bias + relu (f32)
    # fc3 (out_features == 1): VPU mul + sublane reduction -> (1, TB), lane-dense.
    o_ref[...] = jnp.sum(h2 * w3_ref[...], axis=0, keepdims=True) + b3_ref[...]


def net_forward(x, params, *, compute_dtype=jnp.bfloat16, tile_b_max=4096):
    """Forward pass of `Net`. x: any shape flattenable to (-1, 8) (PyTorch view)."""
    w1, b1, w2, b2, w3, b3 = params
    x2d = jnp.asarray(x).reshape(-1, 8).astype(jnp.float32)
    B = x2d.shape[0]

    # Tile the batch; pad B up to a multiple of the tile (thrown-away rows).
    tile_b = min(tile_b_max, _round_up(max(B, 1), 128))
    b_pad = _round_up(B, tile_b)
    grid = (b_pad // tile_b,)

    # Layout plumbing (wrapper-side): batch on the lane axis in and out.
    xt = jnp.pad(x2d, ((0, b_pad - B), (0, 0))).astype(compute_dtype).T  # (8, b_pad)

    # Weights in native PyTorch (out, in) layout; biases as (N, 1) for lane broadcast.
    w1c = w1.astype(compute_dtype)                   # (64, 8)
    w2c = w2.astype(compute_dtype)                   # (32, 64)
    b1c = b1.reshape(-1, 1).astype(jnp.float32)      # (64, 1)
    b2c = b2.reshape(-1, 1).astype(jnp.float32)      # (32, 1)
    w3c = w3.reshape(-1, 1).astype(jnp.float32)      # (32, 1)
    b3c = b3.reshape(1, 1).astype(jnp.float32)       # (1, 1)

    def _const(shape):  # full-array block, resident across all grid steps
        return pl.BlockSpec(shape, lambda i: (0, 0))

    out = pl.pallas_call(
        _mlp_kernel,
        out_shape=jax.ShapeDtypeStruct((1, b_pad), jnp.float32),
        grid=grid,
        in_specs=[
            pl.BlockSpec((8, tile_b), lambda i: (0, i)),   # streamed x tile
            _const(w1c.shape), _const(b1c.shape),
            _const(w2c.shape), _const(b2c.shape),
            _const(w3c.shape), _const(b3c.shape),
        ],
        out_specs=pl.BlockSpec((1, tile_b), lambda i: (0, i)),
        compiler_params=pltpu.CompilerParams(
            dimension_semantics=("parallel",),
            vmem_limit_bytes=32 * 1024 * 1024,
        ),
    )(xt, w1c, b1c, w2c, b2c, w3c, b3c)

    return out[0, :B].reshape(B, 1)


def init_params(key):
    """Deterministic init mimicking nn.Linear default (uniform +/- 1/sqrt(fan_in))."""
    ks = jax.random.split(key, 6)

    def linear(kw, kb, fan_in, fan_out):
        bound = 1.0 / jnp.sqrt(fan_in)
        w = jax.random.uniform(kw, (fan_out, fan_in), jnp.float32, -bound, bound)
        b = jax.random.uniform(kb, (fan_out,), jnp.float32, -bound, bound)
        return w, b

    w1, b1 = linear(ks[0], ks[1], 8, 64)
    w2, b2 = linear(ks[2], ks[3], 64, 32)
    w3, b3 = linear(ks[4], ks[5], 32, 1)
    return (w1, b1, w2, b2, w3, b3)


def _reference(x, params):
    """Pure-JAX reference of the PyTorch forward."""
    w1, b1, w2, b2, w3, b3 = params
    h = jnp.asarray(x).reshape(-1, 8).astype(jnp.float32)
    h = jnp.maximum(h, 0.0) @ w1.T + b1
    h = jnp.maximum(h, 0.0) @ w2.T + b2
    h = jnp.maximum(h, 0.0) @ w3.T + b3
    return h


if __name__ == "__main__":
    key = jax.random.PRNGKey(0)
    k_param, k_x, k_x2 = jax.random.split(key, 3)
    params = init_params(k_param)

    # Small input consistent with x.view(-1, 2*2*2): batch=8 samples of (2, 2, 2).
    x = jax.random.normal(k_x, (8, 2, 2, 2), jnp.float32)
    ref = _reference(x, params)

    # f32 path: bit-faithful matmuls.
    out_f32 = jax.block_until_ready(
        net_forward(x, params, compute_dtype=jnp.float32))
    assert out_f32.shape == (8, 1), out_f32.shape
    assert jnp.allclose(out_f32, ref, atol=1e-4, rtol=1e-4), "f32 mismatch vs reference"

    # Default optimized path (bf16 matmul operands, f32 accumulation): ~1e-3 tolerance.
    out_bf16 = jax.block_until_ready(net_forward(x, params))
    assert out_bf16.shape == (8, 1), out_bf16.shape
    assert jnp.allclose(out_bf16, ref, atol=5e-2, rtol=5e-2), "bf16 mismatch vs reference"

    # Larger, non-tile-multiple batch: exercises the multi-step grid + padding path.
    x_big = jax.random.normal(k_x2, (5003, 2, 2, 2), jnp.float32)
    out_big = jax.block_until_ready(
        net_forward(x_big, params, compute_dtype=jnp.float32))
    ref_big = _reference(x_big, params)
    assert out_big.shape == (5003, 1), out_big.shape
    assert jnp.allclose(out_big, ref_big, atol=1e-4, rtol=1e-3), "gridded mismatch vs reference"

    print("KERNEL_OK")
</pallas_src>

<mosaic_0001>
module attributes {stable_mosaic.version = 11 : i64} {
  func.func @_mlp_kernel(%arg0: i32, %arg1: memref<8x128xf32, #tpu.memory_space<vmem>>, %arg2: memref<64x8xf32, #tpu.memory_space<vmem>>, %arg3: memref<64x1xf32, #tpu.memory_space<vmem>>, %arg4: memref<32x64xf32, #tpu.memory_space<vmem>>, %arg5: memref<32x1xf32, #tpu.memory_space<vmem>>, %arg6: memref<32x1xf32, #tpu.memory_space<vmem>>, %arg7: memref<1x1xf32, #tpu.memory_space<vmem>>, %arg8: memref<1x128xf32, #tpu.memory_space<vmem>>) attributes {dimension_semantics = [#tpu.dimension_semantics<parallel>], iteration_bounds = array<i64: 1>, scalar_prefetch = 0 : i64, scratch_operands = 0 : i64, tpu.core_type = #tpu.core_type<tc>, window_params = [{transform_indices = @transform_0, window_bounds = array<i64: 8, 128>}, {pipeline_mode = #tpu.pipeline_mode<synchronous>, transform_indices = @transform_1, window_bounds = array<i64: 64, 8>}, {pipeline_mode = #tpu.pipeline_mode<synchronous>, transform_indices = @transform_2, window_bounds = array<i64: 64, 1>}, {pipeline_mode = #tpu.pipeline_mode<synchronous>, transform_indices = @transform_3, window_bounds = array<i64: 32, 64>}, {pipeline_mode = #tpu.pipeline_mode<synchronous>, transform_indices = @transform_4, window_bounds = array<i64: 32, 1>}, {pipeline_mode = #tpu.pipeline_mode<synchronous>, transform_indices = @transform_5, window_bounds = array<i64: 32, 1>}, {pipeline_mode = #tpu.pipeline_mode<synchronous>, transform_indices = @transform_6, window_bounds = array<i64: 1, 1>}, {transform_indices = @transform_7, window_bounds = array<i64: 1, 128>}]} {
    %c0 = arith.constant 0 : index
    %c0_0 = arith.constant 0 : index
    %0 = vector.load %arg1[%c0, %c0_0] : memref<8x128xf32, #tpu.memory_space<vmem>>, vector<8x128xf32>
    %cst = arith.constant 0.000000e+00 : f32
    %1 = vector.broadcast %cst : f32 to vector<8x128xf32>
    %2 = arith.maximumf %0, %1 : vector<8x128xf32>
    %c0_1 = arith.constant 0 : index
    %c0_2 = arith.constant 0 : index
    %3 = vector.load %arg2[%c0_1, %c0_2] : memref<64x8xf32, #tpu.memory_space<vmem>>, vector<64x8xf32>
    %cst_3 = arith.constant dense<0.000000e+00> : vector<64x128xf32>
    %4 = tpu.matmul %3, %2, %cst_3 {dimension_numbers = #tpu.dot_dimension_numbers<[1], [0], [0], [1], [0, 0, 1, 1], [], []>} : vector<64x8xf32>, vector<8x128xf32>, vector<64x128xf32> -> vector<64x128xf32>
    %c0_4 = arith.constant 0 : index
    %c0_5 = arith.constant 0 : index
    %5 = vector.load %arg3[%c0_4, %c0_5] : memref<64x1xf32, #tpu.memory_space<vmem>>, vector<64x1xf32>
    %6 = vector.broadcast %5 : vector<64x1xf32> to vector<64x128xf32>
    %7 = arith.addf %4, %6 : vector<64x128xf32>
    %cst_6 = arith.constant 0.000000e+00 : f32
    %8 = vector.broadcast %cst_6 : f32 to vector<64x128xf32>
    %9 = arith.maximumf %7, %8 : vector<64x128xf32>
    %c0_7 = arith.constant 0 : index
    %c0_8 = arith.constant 0 : index
    %10 = vector.load %arg4[%c0_7, %c0_8] : memref<32x64xf32, #tpu.memory_space<vmem>>, vector<32x64xf32>
    %cst_9 = arith.constant dense<0.000000e+00> : vector<32x128xf32>
    %11 = tpu.matmul %10, %9, %cst_9 {dimension_numbers = #tpu.dot_dimension_numbers<[1], [0], [0], [1], [0, 0, 1, 1], [], []>} : vector<32x64xf32>, vector<64x128xf32>, vector<32x128xf32> -> vector<32x128xf32>
    %c0_10 = arith.constant 0 : index
    %c0_11 = arith.constant 0 : index
    %12 = vector.load %arg5[%c0_10, %c0_11] : memref<32x1xf32, #tpu.memory_space<vmem>>, vector<32x1xf32>
    %13 = vector.broadcast %12 : vector<32x1xf32> to vector<32x128xf32>
    %14 = arith.addf %11, %13 : vector<32x128xf32>
    %cst_12 = arith.constant 0.000000e+00 : f32
    %15 = vector.broadcast %cst_12 : f32 to vector<32x128xf32>
    %16 = arith.maximumf %14, %15 : vector<32x128xf32>
    %c0_13 = arith.constant 0 : index
    %c0_14 = arith.constant 0 : index
    %17 = vector.load %arg6[%c0_13, %c0_14] : memref<32x1xf32, #tpu.memory_space<vmem>>, vector<32x1xf32>
    %18 = vector.broadcast %17 : vector<32x1xf32> to vector<32x128xf32>
    %19 = arith.mulf %16, %18 : vector<32x128xf32>
    %cst_15 = arith.constant dense<0.000000e+00> : vector<128xf32>
    %20 = vector.multi_reduction <add>, %19, %cst_15 [0] : vector<32x128xf32> to vector<128xf32>
    %21 = vector.shape_cast %20 : vector<128xf32> to vector<1x128xf32>
    %c0_16 = arith.constant 0 : index
    %c0_17 = arith.constant 0 : index
    %22 = vector.load %arg7[%c0_16, %c0_17] : memref<1x1xf32, #tpu.memory_space<vmem>>, vector<1x1xf32>
    %23 = vector.broadcast %22 : vector<1x1xf32> to vector<1x128xf32>
    %24 = arith.addf %21, %23 : vector<1x128xf32>
    %c0_18 = arith.constant 0 : index
    %c0_19 = arith.constant 0 : index
    %25 = vector.load %arg8[%c0_18, %c0_19] : memref<1x128xf32, #tpu.memory_space<vmem>>, vector<1x128xf32>
    tpu.vector_store %arg8[%c0_18, %c0_19], %24 {strides = array<i32>} : memref<1x128xf32, #tpu.memory_space<vmem>>, vector<1x128xf32>,
    return
  }
  func.func @transform_0(%arg0: i32) -> (i32, i32) {
    %c0_i32 = arith.constant 0 : i32
    %c0_i32_0 = arith.constant 0 : i32
    return %c0_i32, %arg0 : i32, i32
  }
  func.func @transform_1(%arg0: i32) -> (i32, i32) {
    %c0_i32 = arith.constant 0 : i32
    %c0_i32_0 = arith.constant 0 : i32
    %c0_i32_1 = arith.constant 0 : i32
    return %c0_i32, %c0_i32_0 : i32, i32
  }
  func.func @transform_2(%arg0: i32) -> (i32, i32) {
    %c0_i32 = arith.constant 0 : i32
    %c0_i32_0 = arith.constant 0 : i32
    %c0_i32_1 = arith.constant 0 : i32
    return %c0_i32, %c0_i32_0 : i32, i32
  }
  func.func @transform_3(%arg0: i32) -> (i32, i32) {
    %c0_i32 = arith.constant 0 : i32
    %c0_i32_0 = arith.constant 0 : i32
    %c0_i32_1 = arith.constant 0 : i32
    return %c0_i32, %c0_i32_0 : i32, i32
  }
  func.func @transform_4(%arg0: i32) -> (i32, i32) {
    %c0_i32 = arith.constant 0 : i32
    %c0_i32_0 = arith.constant 0 : i32
    %c0_i32_1 = arith.constant 0 : i32
    return %c0_i32, %c0_i32_0 : i32, i32
  }
  func.func @transform_5(%arg0: i32) -> (i32, i32) {
    %c0_i32 = arith.constant 0 : i32
    %c0_i32_0 = arith.constant 0 : i32
    %c0_i32_1 = arith.constant 0 : i32
    return %c0_i32, %c0_i32_0 : i32, i32
  }
  func.func @transform_6(%arg0: i32) -> (i32, i32) {
    %c0_i32 = arith.constant 0 : i32
    %c0_i32_0 = arith.constant 0 : i32
    %c0_i32_1 = arith.constant 0 : i32
    return %c0_i32, %c0_i32_0 : i32, i32
  }
  func.func @transform_7(%arg0: i32) -> (i32, i32) {
    %c0_i32 = arith.constant 0 : i32
    %c0_i32_0 = arith.constant 0 : i32
    return %c0_i32, %arg0 : i32, i32
  }
}

</mosaic_0001>

<llo_original>
// kernel: tpu_custom_call.1
$region0: #{tpu_custom_call.1}
  #allocation0 [shape = 'u32[]', space=smem, size = 0x4, offset = 0x4, fixed_abs, tag = 'smem constant byte address 0x4 - core index']
  #allocation1 [shape = 'u32[144,128]{1,0:T(1,128)}', space=vmem, size = 0x12000, scoped, tag = 'internal scratch']
  #allocation2 [shape = 'f32[1,1]{1,0:T(1,128)S(1)}', space=vmem, size = 0x200, scoped, tag = 'scoped memory for tpu_custom_call.1']
  %s0 = inlined_call_operand.vmem [shape: f32[8,128], index: 0, kind: input, shape index: {}]
  %s1 = inlined_call_operand.vmem [shape: f32[64,8], index: 1, kind: input, shape index: {}]
  %s2 = inlined_call_operand.vmem [shape: f32[64,1], index: 2, kind: input, shape index: {}]
  %s3 = inlined_call_operand.vmem [shape: f32[32,64], index: 3, kind: input, shape index: {}]
  %s4 = inlined_call_operand.vmem [shape: f32[32,1], index: 4, kind: input, shape index: {}]
  %s5 = inlined_call_operand.vmem [shape: f32[32,1], index: 5, kind: input, shape index: {}]
  %s6 = inlined_call_operand.<no memory space> [shape: f32[1,1], index: 6, kind: input, shape index: {}]
  %s7 = inlined_call_operand.hbm [shape: f32[1,128], index: 7, kind: output, shape index: {}]
  %s8 = sld [smem:[#allocation0]]
  $region38: #{tpu_custom_call.1} parent=0
    _
  %s10 = ssub.s32 1, %s8
  %s11 = scalar_select 0, %s10, %s8
  %v12 = vstv %s6
  %13 = vst [vmem:[#allocation2] sm:$0x1] %v12
  $region1: #{tpu_custom_call.1} parent=0
    #allocation3 [shape = 'u8[512]{0}', space=vmem, size = 0x400, scoped, tag = 'output window, operand 0, single buffered']
    #allocation4 [shape = 's32[1]{0}', space=sflag, size = 0x4, scoped, tag = 'scoped memory for tpu_custom_call.1']
    %14 = vsyncpa [#allocation4], 0
    // Predicated region
    $region2: #{tpu_custom_call.1} parent=1 // pred_check
      _
    $region3: #{tpu_custom_call.1} parent=1 // pred_check_branch
      %16 = sbr.rel (0) target = $region5
    $region4: #{tpu_custom_call.1} parent=1 // pred_region
      _
    $region5: #{tpu_custom_call.1} parent=1 // pred_fallthru
      _
    // Predicated region
    $region6: #{tpu_custom_call.1} parent=1 // pred_check
      _
    $region7: #{tpu_custom_call.1} parent=1 // pred_check_branch
      %18 = sbr.rel (0) target = $region9
    $region8: #{tpu_custom_call.1} parent=1 // pred_region
      _
    $region9: #{tpu_custom_call.1} parent=1 // pred_fallthru
      _
    // Predicated region
    $region10: #{tpu_custom_call.1} parent=1 // pred_check
      _
    $region11: #{tpu_custom_call.1} parent=1 // pred_check_branch
      %20 = sbr.rel (0) target = $region13
    $region12: #{tpu_custom_call.1} parent=1 // pred_region
      _
    $region13: #{tpu_custom_call.1} parent=1 // pred_fallthru
      _
    // Predicated region
    $region14: #{tpu_custom_call.1} parent=1 // pred_check
      _
    $region15: #{tpu_custom_call.1} parent=1 // pred_check_branch
      %22 = sbr.rel (0) target = $region17
    $region16: #{tpu_custom_call.1} parent=1 // pred_region
      _
    $region17: #{tpu_custom_call.1} parent=1 // pred_fallthru
      _
    // Predicated region
    $region18: #{tpu_custom_call.1} parent=1 // pred_check
      _
    $region19: #{tpu_custom_call.1} parent=1 // pred_check_branch
      %24 = sbr.rel (0) target = $region21
    $region20: #{tpu_custom_call.1} parent=1 // pred_region
      _
    $region21: #{tpu_custom_call.1} parent=1 // pred_fallthru
      _
    // Predicated region
    $region22: #{tpu_custom_call.1} parent=1 // pred_check
      _
    $region23: #{tpu_custom_call.1} parent=1 // pred_check_branch
      %26 = sbr.rel (0) target = $region25
    $region24: #{tpu_custom_call.1} parent=1 // pred_region
      _
    $region25: #{tpu_custom_call.1} parent=1 // pred_fallthru
      _
    // Predicated region
    $region26: #{tpu_custom_call.1} parent=1 // pred_check
      _
    $region27: #{tpu_custom_call.1} parent=1 // pred_check_branch
      %28 = sbr.rel (0) target = $region29
    $region28: #{tpu_custom_call.1} parent=1 // pred_region
      _
    $region29: #{tpu_custom_call.1} parent=1 // pred_fallthru
      _
    %v29 = vld [vmem:[%s0] sm:$0xff]
    %v30 = vmax.f32 %v29, 0.0
    %v31 = vld [vmem:[%s1] sm:$0xff]
    %v32 = vld [vmem:[%s1 + $0x8] sm:$0xff]
    %v33 = vld [vmem:[%s1 + $0x10] sm:$0xff]
    %v34 = vld [vmem:[%s1 + $0x18] sm:$0xff]
    %v35 = vld [vmem:[%s1 + $0x20] sm:$0xff]
    %v36 = vld [vmem:[%s1 + $0x28] sm:$0xff]
    %v37 = vld [vmem:[%s1 + $0x30] sm:$0xff]
    %v38 = vld [vmem:[%s1 + $0x38] sm:$0xff]
    %v39 = vld [vmem:[%s2] sm:$0xff]
    %v40 = vld [vmem:[%s2 + $0x8] sm:$0xff]
    %v41 = vld [vmem:[%s2 + $0x10] sm:$0xff]
    %v42 = vld [vmem:[%s2 + $0x18] sm:$0xff]
    %v43 = vld [vmem:[%s2 + $0x20] sm:$0xff]
    %v44 = vld [vmem:[%s2 + $0x28] sm:$0xff]
    %v45 = vld [vmem:[%s2 + $0x30] sm:$0xff]
    %v46 = vld [vmem:[%s2 + $0x38] sm:$0xff]
    %48 = vset.pattern.permute.xlu0 0
    %49 = vperm.xlu0 %48, %v39
    %v50 = vpop.permute.xlu0 %49
    %53 = vset.pattern.permute.xlu0 0
    %54 = vperm.xlu0 %53, %v40
    %v55 = vpop.permute.xlu0 %54
    %58 = vset.pattern.permute.xlu0 0
    %59 = vperm.xlu0 %58, %v41
    %v60 = vpop.permute.xlu0 %59
    %63 = vset.pattern.permute.xlu0 0
    %64 = vperm.xlu0 %63, %v42
    %v65 = vpop.permute.xlu0 %64
    %68 = vset.pattern.permute.xlu0 0
    %69 = vperm.xlu0 %68, %v43
    %v70 = vpop.permute.xlu0 %69
    %73 = vset.pattern.permute.xlu0 0
    %74 = vperm.xlu0 %73, %v44
    %v75 = vpop.permute.xlu0 %74
    %78 = vset.pattern.permute.xlu0 0
    %79 = vperm.xlu0 %78, %v45
    %v80 = vpop.permute.xlu0 %79
    %83 = vset.pattern.permute.xlu0 0
    %84 = vperm.xlu0 %83, %v46
    %v85 = vpop.permute.xlu0 %84
    %vm87 = vcmask 64512
    %v89 = vsel %vm87, %v31, 0
    %v92 = vsel %vm87, %v32, 0
    %v95 = vsel %vm87, %v33, 0
    %v98 = vsel %vm87, %v34, 0
    %v101 = vsel %vm87, %v35, 0
    %v104 = vsel %vm87, %v36, 0
    %v107 = vsel %vm87, %v37, 0
    %v110 = vsel %vm87, %v38, 0
    %112 = vmatprep.subr.mxu0 0.0
    %113 = vmatpush1.msra.mxu0 0.0
    %114 = vmatprep.subr.mxu0 0.0
    %115 = vmatpush1.msra.mxu0 0.0
    %116 = vmatprep.subr.mxu0 0.0
    %117 = vmatpush1.msra.mxu0 0.0
    %118 = vmatprep.subr.mxu0 0.0
    %119 = vmatpush1.msra.mxu0 0.0
    %120 = vmatprep.subr.mxu0 0.0
    %121 = vmatpush1.msra.mxu0 0.0
    %122 = vmatprep.subr.mxu0 0.0
    %123 = vmatpush1.msra.mxu0 0.0
    %124 = vmatprep.subr.mxu0 0.0
    %125 = vmatpush1.msra.mxu0 0.0
    %126 = vmatprep.subr.mxu0 0.0
    %127 = vmatpush1.msra.mxu0 0.0
    %128 = vmatprep.subr.mxu0 0.0
    %129 = vmatpush1.msra.mxu0 0.0
    %130 = vmatprep.subr.mxu0 0.0
    %131 = vmatpush1.msra.mxu0 0.0
    %132 = vmatprep.subr.mxu0 0.0
    %133 = vmatpush1.msra.mxu0 0.0
    %134 = vmatprep.subr.mxu0 0.0
    %135 = vmatpush1.msra.mxu0 0.0
    %136 = vmatprep.subr.mxu0 0.0
    %137 = vmatpush1.msra.mxu0 0.0
    %138 = vmatprep.subr.mxu0 0.0
    %139 = vmatpush1.msra.mxu0 0.0
    %140 = vmatprep.subr.mxu0 0.0
    %141 = vmatpush1.msra.mxu0 0.0
    %142 = vmatprep.subr.mxu0 0.0
    %143 = vmatpush1.msra.mxu0 %v30
    %144 = vmatprep.subr.mxu0 0.0
    %145 = vmatpush2.msra.mxu0 0.0
    %146 = vmatprep.subr.mxu0 0.0
    %147 = vmatpush2.msra.mxu0 0.0
    %148 = vmatprep.subr.mxu0 0.0
    %149 = vmatpush2.msra.mxu0 0.0
    %150 = vmatprep.subr.mxu0 0.0
    %151 = vmatpush2.msra.mxu0 0.0
    %152 = vmatprep.subr.mxu0 0.0
    %153 = vmatpush2.msra.mxu0 0.0
    %154 = vmatprep.subr.mxu0 0.0
    %155 = vmatpush2.msra.mxu0 0.0
    %156 = vmatprep.subr.mxu0 0.0
    %157 = vmatpush2.msra.mxu0 0.0
    %158 = vmatprep.subr.mxu0 0.0
    %159 = vmatpush2.msra.mxu0 0.0
    %160 = vmatprep.subr.mxu0 0.0
    %161 = vmatpush2.msra.mxu0 0.0
    %162 = vmatprep.subr.mxu0 0.0
    %163 = vmatpush2.msra.mxu0 0.0
    %164 = vmatprep.subr.mxu0 0.0
    %165 = vmatpush2.msra.mxu0 0.0
    %166 = vmatprep.subr.mxu0 0.0
    %167 = vmatpush2.msra.mxu0 0.0
    %168 = vmatprep.subr.mxu0 0.0
    %169 = vmatpush2.msra.mxu0 0.0
    %170 = vmatprep.subr.mxu0 0.0
    %171 = vmatpush2.msra.mxu0 0.0
    %172 = vmatprep.subr.mxu0 0.0
    %173 = vmatpush2.msra.mxu0 0.0
    %174 = vmatprep.subr.mxu0 0.0
    %175 = vmatpush2.msra.mxu0 0.0
    %176 = vmatprep.mubr.f32.mxu0 0.0
    %177 = vmatmul.mubr.f32.gmra.mxu0 %v89
    %v178 = vpop.f32.mrf.mxu0
    %v179 = vadd.f32 %v50, %v178
    %v180 = vpop.f32.mrf.mxu0
    %181 = vmatprep.mubr.f32.mxu0 0.0
    %182 = vmatmul.mubr.f32.gmra.mxu0 %v92
    %v183 = vpop.f32.mrf.mxu0
    %v184 = vadd.f32 %v55, %v183
    %v185 = vpop.f32.mrf.mxu0
    %186 = vmatprep.mubr.f32.mxu0 0.0
    %187 = vmatmul.mubr.f32.gmra.mxu0 %v95
    %v188 = vpop.f32.mrf.mxu0
    %v189 = vadd.f32 %v60, %v188
    %v190 = vpop.f32.mrf.mxu0
    %191 = vmatprep.mubr.f32.mxu0 0.0
    %192 = vmatmul.mubr.f32.gmra.mxu0 %v98
    %v193 = vpop.f32.mrf.mxu0
    %v194 = vadd.f32 %v65, %v193
    %v195 = vpop.f32.mrf.mxu0
    %196 = vmatprep.mubr.f32.mxu0 0.0
    %197 = vmatmul.mubr.f32.gmra.mxu0 %v101
    %v198 = vpop.f32.mrf.mxu0
    %v199 = vadd.f32 %v70, %v198
    %v200 = vpop.f32.mrf.mxu0
    %201 = vmatprep.mubr.f32.mxu0 0.0
    %202 = vmatmul.mubr.f32.gmra.mxu0 %v104
    %v203 = vpop.f32.mrf.mxu0
    %v204 = vadd.f32 %v75, %v203
    %v205 = vpop.f32.mrf.mxu0
    %206 = vmatprep.mubr.f32.mxu0 0.0
    %207 = vmatmul.mubr.f32.gmra.mxu0 %v107
    %v208 = vpop.f32.mrf.mxu0
    %v209 = vadd.f32 %v80, %v208
    %v210 = vpop.f32.mrf.mxu0
    %211 = vmatprep.mubr.f32.mxu0 0.0
    %212 = vmatmul.mubr.f32.gmra.mxu0 %v110
    %v213 = vpop.f32.mrf.mxu0
    %v214 = vadd.f32 %v85, %v213
    %v215 = vpop.f32.mrf.mxu0
    %216 = vdwg.mxu0
    %v217 = vmax.f32 %v179, 0.0
    %v218 = vmax.f32 %v184, 0.0
    %v219 = vmax.f32 %v189, 0.0
    %v220 = vmax.f32 %v194, 0.0
    %v221 = vmax.f32 %v199, 0.0
    %v222 = vmax.f32 %v204, 0.0
    %v223 = vmax.f32 %v209, 0.0
    %v224 = vmax.f32 %v214, 0.0
    %v225 = vld [vmem:[%s3] sm:$0xff]
    %v226 = vld [vmem:[%s3 + $0x8] sm:$0xff]
    %v227 = vld [vmem:[%s3 + $0x10] sm:$0xff]
    %v228 = vld [vmem:[%s3 + $0x18] sm:$0xff]
    %v229 = vld [vmem:[%s4] sm:$0xff]
    %v230 = vld [vmem:[%s4 + $0x8] sm:$0xff]
    %v231 = vld [vmem:[%s4 + $0x10] sm:$0xff]
    %v232 = vld [vmem:[%s4 + $0x18] sm:$0xff]
    %234 = vset.pattern.permute.xlu0 0
    %235 = vperm.xlu0 %234, %v229
    %v236 = vpop.permute.xlu0 %235
    %239 = vset.pattern.permute.xlu0 0
    %240 = vperm.xlu0 %239, %v230
    %v241 = vpop.permute.xlu0 %240
    %244 = vset.pattern.permute.xlu0 0
    %245 = vperm.xlu0 %244, %v231
    %v246 = vpop.permute.xlu0 %245
    %249 = vset.pattern.permute.xlu0 0
    %250 = vperm.xlu0 %249, %v232
    %v251 = vpop.permute.xlu0 %250
    %vm253 = vcmask 523264
    %v255 = vsel %vm253, %v225, 0
    %v258 = vsel %vm253, %v226, 0
    %v261 = vsel %vm253, %v227, 0
    %v264 = vsel %vm253, %v228, 0
    %266 = vmatprep.subr.mxu0 0.0
    %267 = vmatpush1.msra.mxu0 0.0
    %268 = vmatprep.subr.mxu0 0.0
    %269 = vmatpush1.msra.mxu0 0.0
    %270 = vmatprep.subr.mxu0 0.0
    %271 = vmatpush1.msra.mxu0 0.0
    %272 = vmatprep.subr.mxu0 0.0
    %273 = vmatpush1.msra.mxu0 0.0
    %274 = vmatprep.subr.mxu0 0.0
    %275 = vmatpush1.msra.mxu0 0.0
    %276 = vmatprep.subr.mxu0 0.0
    %277 = vmatpush1.msra.mxu0 0.0
    %278 = vmatprep.subr.mxu0 0.0
    %279 = vmatpush1.msra.mxu0 0.0
    %280 = vmatprep.subr.mxu0 0.0
    %281 = vmatpush1.msra.mxu0 0.0
    %282 = vmatprep.subr.mxu0 0.0
    %283 = vmatpush1.msra.mxu0 %v224
    %284 = vmatprep.subr.mxu0 0.0
    %285 = vmatpush1.msra.mxu0 %v223
    %286 = vmatprep.subr.mxu0 0.0
    %287 = vmatpush1.msra.mxu0 %v222
    %288 = vmatprep.subr.mxu0 0.0
    %289 = vmatpush1.msra.mxu0 %v221
    %290 = vmatprep.subr.mxu0 0.0
    %291 = vmatpush1.msra.mxu0 %v220
    %292 = vmatprep.subr.mxu0 0.0
    %293 = vmatpush1.msra.mxu0 %v219
    %294 = vmatprep.subr.mxu0 0.0
    %295 = vmatpush1.msra.mxu0 %v218
    %296 = vmatprep.subr.mxu0 0.0
    %297 = vmatpush1.msra.mxu0 %v217
    %298 = vmatprep.subr.mxu0 0.0
    %299 = vmatpush2.msra.mxu0 0.0
    %300 = vmatprep.subr.mxu0 0.0
    %301 = vmatpush2.msra.mxu0 0.0
    %302 = vmatprep.subr.mxu0 0.0
    %303 = vmatpush2.msra.mxu0 0.0
    %304 = vmatprep.subr.mxu0 0.0
    %305 = vmatpush2.msra.mxu0 0.0
    %306 = vmatprep.subr.mxu0 0.0
    %307 = vmatpush2.msra.mxu0 0.0
    %308 = vmatprep.subr.mxu0 0.0
    %309 = vmatpush2.msra.mxu0 0.0
    %310 = vmatprep.subr.mxu0 0.0
    %311 = vmatpush2.msra.mxu0 0.0
    %312 = vmatprep.subr.mxu0 0.0
    %313 = vmatpush2.msra.mxu0 0.0
    %314 = vmatprep.subr.mxu0 0.0
    %315 = vmatpush2.msra.mxu0 0.0
    %316 = vmatprep.subr.mxu0 0.0
    %317 = vmatpush2.msra.mxu0 0.0
    %318 = vmatprep.subr.mxu0 0.0
    %319 = vmatpush2.msra.mxu0 0.0
    %320 = vmatprep.subr.mxu0 0.0
    %321 = vmatpush2.msra.mxu0 0.0
    %322 = vmatprep.subr.mxu0 0.0
    %323 = vmatpush2.msra.mxu0 0.0
    %324 = vmatprep.subr.mxu0 0.0
    %325 = vmatpush2.msra.mxu0 0.0
    %326 = vmatprep.subr.mxu0 0.0
    %327 = vmatpush2.msra.mxu0 0.0
    %328 = vmatprep.subr.mxu0 0.0
    %329 = vmatpush2.msra.mxu0 0.0
    %330 = vmatprep.mubr.f32.mxu0 0.0
    %331 = vmatmul.mubr.f32.gmra.mxu0 %v255
    %v332 = vpop.f32.mrf.mxu0
    %v333 = vadd.f32 %v236, %v332
    %v334 = vpop.f32.mrf.mxu0
    %335 = vmatprep.mubr.f32.mxu0 0.0
    %336 = vmatmul.mubr.f32.gmra.mxu0 %v258
    %v337 = vpop.f32.mrf.mxu0
    %v338 = vadd.f32 %v241, %v337
    %v339 = vpop.f32.mrf.mxu0
    %340 = vmatprep.mubr.f32.mxu0 0.0
    %341 = vmatmul.mubr.f32.gmra.mxu0 %v261
    %v342 = vpop.f32.mrf.mxu0
    %v343 = vadd.f32 %v246, %v342
    %v344 = vpop.f32.mrf.mxu0
    %345 = vmatprep.mubr.f32.mxu0 0.0
    %346 = vmatmul.mubr.f32.gmra.mxu0 %v264
    %v347 = vpop.f32.mrf.mxu0
    %v348 = vadd.f32 %v251, %v347
    %v349 = vpop.f32.mrf.mxu0
    %350 = vdwg.mxu0
    %v351 = vmax.f32 %v333, 0.0
    %v352 = vmax.f32 %v338, 0.0
    %v353 = vmax.f32 %v343, 0.0
    %v354 = vmax.f32 %v348, 0.0
    %v355 = vld [vmem:[%s5] sm:$0xff]
    %v356 = vld [vmem:[%s5 + $0x8] sm:$0xff]
    %v357 = vld [vmem:[%s5 + $0x10] sm:$0xff]
    %v358 = vld [vmem:[%s5 + $0x18] sm:$0xff]
    %360 = vset.pattern.permute.xlu0 0
    %361 = vperm.xlu0 %360, %v355
    %v362 = vpop.permute.xlu0 %361
    %365 = vset.pattern.permute.xlu0 0
    %366 = vperm.xlu0 %365, %v356
    %v367 = vpop.permute.xlu0 %366
    %370 = vset.pattern.permute.xlu0 0
    %371 = vperm.xlu0 %370, %v357
    %v372 = vpop.permute.xlu0 %371
    %375 = vset.pattern.permute.xlu0 0
    %376 = vperm.xlu0 %375, %v358
    %v377 = vpop.permute.xlu0 %376
    %v379 = vmul.f32 %v351, %v362
    %v380 = vmul.f32 %v352, %v367
    %v381 = vmul.f32 %v353, %v372
    %v382 = vmul.f32 %v354, %v377
    %v383 = vadd.f32 %v379, %v380
    %v384 = vadd.f32 %v383, %v381
    %v385 = vadd.f32 %v384, %v382
    %v386 = vrot.slane %v385, 4
    %v387 = vadd.f32 %v385, %v386
    %v388 = vrot.slane %v387, 2
    %v389 = vadd.f32 %v387, %v388
    %v390 = vrot.slane %v389, 1
    %v391 = vadd.f32 %v389, %v390
    %v392 = vld [vmem:[#allocation2] sm:$0x1]
    %394 = vset.pattern.permute.xlu0 0
    %395 = vperm.xlu0 %394, %v392
    %v396 = vpop.permute.xlu0 %395
    %v398 = vlaneseq
    %v399 = vshrl.u32 %v398, 7
    %v400 = vsub.s32 0, %v399
    %v401 = vrot.slane %v396, %v400
    %v402 = vadd.f32 %v391, %v401
    %403 = vst [vmem:[#allocation3] sm:$0x1] %v402
    // Predicated region
    $region30: #{tpu_custom_call.1} parent=1 // pred_check
      _
    $region31: #{tpu_custom_call.1} parent=1 // pred_check_branch
      %405 = sbr.rel (0) target = $region33
    $region32: #{tpu_custom_call.1} parent=1 // pred_region
      %s407 = ssub.s32 16, 16
      %408 = vsyncadd [#allocation4], %s407
      %s410 = sshll.u32 [#allocation3], 4
      %s411 = int_to_ptr.vmem [resolvable:$true] %s410
      %413 = dma.vmem_to_hbm [thread:$0]  %s411, 16, %s7, [#allocation4]
    $region33: #{tpu_custom_call.1} parent=1 // pred_fallthru
      _
    // Predicated region
    $region34: #{tpu_custom_call.1} parent=1 // pred_check
      _
    $region35: #{tpu_custom_call.1} parent=1 // pred_check_branch
      %415 = sbr.rel (0) target = $region37
    $region36: #{tpu_custom_call.1} parent=1 // pred_region
      %416 = dma.done [#allocation4], 16
    $region37: #{tpu_custom_call.1} parent=1 // pred_fallthru
      _
    %417 = vsyncpa [#allocation4], 1

</llo_original>
